<compile_context>
chip_gen: v5e
topology: v5e:2x2
jax: 0.10.0
libtpu: 0.0.40
codegen_flags: <defaults>
</compile_context>

<pallas_src>
import jax
import jax.numpy as jnp
from jax.experimental import pallas as pl
from jax.experimental.pallas import tpu as pltpu

BETA = 1.5      # global `beta` in the reference script
GAMMA = 1.0     # global `gamma` in the reference script
DT = 0.4103     # hard-coded dt in ODEFunc.integral
T_GRID = 40     # integral() hard-codes g.reshape(40, 2)  ->  time grid length 40
HID = 20        # Memory MLP hidden width

_VMEM = pl.BlockSpec(memory_space=pltpu.MemorySpace.VMEM)


# ---------------------------------------------------------------------------------------------
# Kernel 1: Memory MLP  gg = MLP(flip(time))  ->  [1, T_GRID]     (run ONCE per trajectory)
# ---------------------------------------------------------------------------------------------
def _memory_kernel(t_ref, wsq_ref, vecs_ref, gg_ref):
    """Column-oriented MLP: hidden states are [HID, T_GRID] so the time axis stays on lanes."""
    t_row = t_ref[...]                        # [1, T]    flipped time grid, lane-dense
    w1 = vecs_ref[:, 0:1]                     # [HID, 1]  == W1[:, 0]
    b1 = vecs_ref[:, 1:2]                     # [HID, 1]
    b2 = vecs_ref[:, 2:3]
    b3 = vecs_ref[:, 3:4]
    w4 = vecs_ref[:, 4:5]                     # [HID, 1]  == W4[0, :]
    b4 = vecs_ref[0:1, 5:6]                   # [1, 1]

    h = jnp.tanh(w1 * t_row + b1)                                                   # [HID, T]
    h = jnp.tanh(jnp.dot(wsq_ref[0], h, preferred_element_type=jnp.float32) + b2)   # [HID, T]
    h = jnp.tanh(jnp.dot(wsq_ref[1], h, preferred_element_type=jnp.float32) + b3)   # [HID, T]
    # last layer (HID -> 1) as a sublane reduction; result stays lane-dense.
    gg_ref[...] = jnp.sum(w4 * h, axis=0, keepdims=True) + b4                       # [1, T]


def prepare_memory_inputs(time, params):
    """One-time packing of the Memory MLP inputs (hoisted out of the per-trajectory path).

    PyTorch's interleaved duplication (t.repeat(1,2).reshape(-1,1)) makes both columns of
    gg.reshape(40, 2) identical, so evaluating each unique time once is bit-identical.
    """
    W1, b1, W2, b2, W3, b3, W4, b4 = params   # PyTorch layout: W [out, in], b [out]
    t_row = jnp.flip(time.astype(jnp.float32), 0).reshape(1, T_GRID)
    wsq = jnp.stack([W2, W3], axis=0).astype(jnp.float32)                            # [2, HID, HID]
    b4_col = jnp.zeros((HID,), jnp.float32).at[0].set(b4[0])
    vecs = jnp.stack([W1[:, 0], b1, b2, b3, W4[0, :], b4_col], axis=1)               # [HID, 6]
    return t_row, wsq.astype(jnp.float32), vecs.astype(jnp.float32)


def memory_gg(t_row, wsq, vecs):
    """gg = Memory()(time), deduplicated & lane-dense: gg[0, i] == MLP(flip(time)[i])."""
    return pl.pallas_call(
        _memory_kernel,
        out_shape=jax.ShapeDtypeStruct((1, T_GRID), jnp.float32),
        in_specs=[_VMEM, _VMEM, _VMEM],
        out_specs=_VMEM,
    )(t_row, wsq, vecs)


# ---------------------------------------------------------------------------------------------
# Kernel 2: per-step SIR right-hand side  (fixed shapes -> ONE cached program for every step)
# ---------------------------------------------------------------------------------------------
def _rhs_kernel(gg_ref, y_ref, ihist_ref, out_ref):
    gg = gg_ref[...]                                                      # [1, T_GRID]
    i_hist = ihist_ref[...]                                               # [B, T_GRID] left-0-padded
    integro = jnp.sum(i_hist * gg, axis=1, keepdims=True) * DT            # [B, 1]  lane reduction
    y = y_ref[...]                                                        # [B, 3]
    S = y[:, 0:1]
    I = y[:, 1:2]
    SI = BETA * S * I
    # Direct slice stores (no concatenate -> purely VPU, no XLU in the per-step body).
    out_ref[:, 0:1] = -SI + integro
    out_ref[:, 1:2] = SI - GAMMA * I
    out_ref[:, 2:3] = GAMMA * I - integro


@jax.jit
def sir_rhs(gg, y, i_hist):
    """dy/dt for a fixed-shape, solver-maintained history buffer.  Shapes never depend on J."""
    B = y.shape[0]
    return pl.pallas_call(
        _rhs_kernel,
        out_shape=jax.ShapeDtypeStruct((B, 3), jnp.float32),
        in_specs=[_VMEM, _VMEM, _VMEM],
        out_specs=_VMEM,
    )(gg, y.astype(jnp.float32), i_hist.astype(jnp.float32))


def pad_i_history(y_series):
    """[J, B, 3] history -> fixed [B, T_GRID] lane-major I-history, left-zero-padded.

    Live entries sit in the LAST J lanes so they align with gg[-J:]; the zero padding (the
    'old' side) contributes exactly 0 to the integral, so results are bit-compatible with the
    variable-length PyTorch formulation.
    """
    J, _, _ = y_series.shape
    assert 1 <= J <= T_GRID, f"history length j={J} must be in [1, {T_GRID}] (PyTorch g[-j:] semantics)"
    i_hist = jnp.transpose(y_series[:, :, 1]).astype(jnp.float32)         # [B, J]
    return jnp.pad(i_hist, ((0, 0), (T_GRID - J, 0)))                     # [B, T_GRID]


def ode_func_forward(t_scalar, y, y_series, time=None, params=None, gg=None, packed=None):
    """Pallas equivalent of ODEFunc.forward(t, y, y_series=..., time=..., j=len(y_series)).

    PyTorch recomputes & caches `self.gg` when t == 0 and reuses it otherwise.  The cache is
    explicit here: pass gg=None to (re)compute it (the t == 0 path) and feed the returned gg back
    on later calls.  `packed` (from prepare_memory_inputs) lets callers hoist parameter packing
    out of the trajectory loop.  Returns (dydt [batch, 3], gg [1, T_GRID]).
    """
    del t_scalar  # only used for the stateful caching guard in PyTorch; caching is explicit here
    if gg is None:                      # == the t.item() == 0 branch
        if packed is None:
            packed = prepare_memory_inputs(time, params)
        gg = memory_gg(*packed)
    out = sir_rhs(gg, y, pad_i_history(y_series))
    return out, gg


# ---------------------------------------------------------------------------------------------
# Init + pure-JAX reference (for the correctness check below)
# ---------------------------------------------------------------------------------------------
def init_params(key):
    """Deterministic synthetic init (normal(0, 0.1) weights, zero bias), PyTorch [out, in] layout."""
    ks = jax.random.split(key, 4)

    def lin(k, fan_in, fan_out):
        w = 0.1 * jax.random.normal(k, (fan_out, fan_in), jnp.float32)   # [out, in]
        b = jnp.zeros((fan_out,), jnp.float32)
        return w, b

    W1, b1 = lin(ks[0], 1, HID)
    W2, b2 = lin(ks[1], HID, HID)
    W3, b3 = lin(ks[2], HID, HID)
    W4, b4 = lin(ks[3], HID, 1)
    return (W1, b1, W2, b2, W3, b3, W4, b4)


def _reference_forward(y, y_series, time, params):
    """Pure-JAX transcription of the PyTorch forward (including the interleaved duplication)."""
    W1, b1, W2, b2, W3, b3, W4, b4 = params
    t_col = jnp.flip(time, 0).reshape(-1, 1)
    t_dup = jnp.repeat(t_col, 2, axis=0)                          # [80, 1]  (t0,t0,t1,t1,...)
    h = jnp.tanh(t_dup @ W1.T + b1)
    h = jnp.tanh(h @ W2.T + b2)
    h = jnp.tanh(h @ W3.T + b3)
    gg = (h @ W4.T + b4).reshape(T_GRID, 2)                       # columns identical
    J = y_series.shape[0]
    I_hist = y_series[:, :, 1]                                    # [J, B]  (reference assumes B == 2)
    integro = (I_hist * gg[T_GRID - J:] * DT).sum(0).reshape(-1, 1)
    S = y[:, 0:1]
    I = y[:, 1:2]
    return jnp.concatenate(
        [-BETA * S * I + integro, BETA * S * I - GAMMA * I, GAMMA * I - integro], axis=1)


if __name__ == "__main__":
    key = jax.random.PRNGKey(0)
    kp, ky, ks = jax.random.split(key, 3)
    params = init_params(kp)

    time = jnp.linspace(0.0, 80.0, T_GRID).astype(jnp.float32)       # memory time grid, length 40
    y = jax.random.uniform(ky, (2, 3), dtype=jnp.float32)            # batch=2, state=(S, I, R)

    packed = prepare_memory_inputs(time, params)                     # one-time parameter packing

    gg = None
    # Two different history lengths exercise the SAME cached, fixed-shape RHS program.
    for J in (16, 25):
        y_series = jax.random.uniform(jax.random.fold_in(ks, J), (J, 2, 3), dtype=jnp.float32)

        # t == 0: gg is (re)computed by the one-shot memory kernel.
        out0, gg = ode_func_forward(jnp.float32(0.0), y, y_series, time, params, packed=packed)
        # t != 0: reuse the cached gg -> only the tiny fixed-shape RHS kernel runs.
        out1, _ = ode_func_forward(jnp.float32(0.5), y, y_series, time, params, gg=gg)
        # Solver-maintained fixed [B, T_GRID] history path (no per-step transpose/pad at all).
        out2 = sir_rhs(gg, y, pad_i_history(y_series))

        jax.block_until_ready((out0, out1, out2, gg))

        ref = _reference_forward(y, y_series, time, params)
        for o in (out0, out1, out2):
            assert o.shape == (2, 3) and o.dtype == jnp.float32
            assert jnp.allclose(o, ref, rtol=1e-3, atol=1e-3)

    assert gg.shape == (1, T_GRID) and gg.dtype == jnp.float32
    print("KERNEL_OK")
</pallas_src>

<mosaic_0001>
module attributes {stable_mosaic.version = 11 : i64} {
  func.func @_memory_kernel(%arg0: memref<1x40xf32, #tpu.memory_space<vmem>>, %arg1: memref<2x20x20xf32, #tpu.memory_space<vmem>>, %arg2: memref<20x6xf32, #tpu.memory_space<vmem>>, %arg3: memref<1x40xf32, #tpu.memory_space<vmem>>) attributes {dimension_semantics = [], scalar_prefetch = 0 : i64, scratch_operands = 0 : i64, tpu.core_type = #tpu.core_type<tc>} {
    %c0 = arith.constant 0 : index
    %c0_0 = arith.constant 0 : index
    %0 = vector.load %arg0[%c0, %c0_0] : memref<1x40xf32, #tpu.memory_space<vmem>>, vector<1x40xf32>
    %c0_1 = arith.constant 0 : index
    %c0_2 = arith.constant 0 : index
    %1 = vector.load %arg2[%c0_1, %c0_2] : memref<20x6xf32, #tpu.memory_space<vmem>>, vector<20x1xf32>
    %c0_3 = arith.constant 0 : index
    %c1 = arith.constant 1 : index
    %2 = vector.load %arg2[%c0_3, %c1] : memref<20x6xf32, #tpu.memory_space<vmem>>, vector<20x1xf32>
    %c0_4 = arith.constant 0 : index
    %c2 = arith.constant 2 : index
    %3 = vector.load %arg2[%c0_4, %c2] : memref<20x6xf32, #tpu.memory_space<vmem>>, vector<20x1xf32>
    %c0_5 = arith.constant 0 : index
    %c3 = arith.constant 3 : index
    %4 = vector.load %arg2[%c0_5, %c3] : memref<20x6xf32, #tpu.memory_space<vmem>>, vector<20x1xf32>
    %c0_6 = arith.constant 0 : index
    %c4 = arith.constant 4 : index
    %5 = vector.load %arg2[%c0_6, %c4] : memref<20x6xf32, #tpu.memory_space<vmem>>, vector<20x1xf32>
    %c0_7 = arith.constant 0 : index
    %c5 = arith.constant 5 : index
    %6 = vector.load %arg2[%c0_7, %c5] : memref<20x6xf32, #tpu.memory_space<vmem>>, vector<1x1xf32>
    %7 = vector.broadcast %1 : vector<20x1xf32> to vector<20x40xf32>
    %8 = vector.broadcast %0 : vector<1x40xf32> to vector<20x40xf32>
    %9 = arith.mulf %7, %8 : vector<20x40xf32>
    %10 = vector.broadcast %2 : vector<20x1xf32> to vector<20x40xf32>
    %11 = arith.addf %9, %10 : vector<20x40xf32>
    %12 = math.tanh %11 : vector<20x40xf32>
    %c0_8 = arith.constant 0 : index
    %c0_9 = arith.constant 0 : index
    %c0_10 = arith.constant 0 : index
    %13 = vector.load %arg1[%c0_8, %c0_9, %c0_10] : memref<2x20x20xf32, #tpu.memory_space<vmem>>, vector<1x20x20xf32>
    %14 = vector.shape_cast %13 : vector<1x20x20xf32> to vector<20x20xf32>
    %cst = arith.constant dense<0.000000e+00> : vector<20x40xf32>
    %15 = tpu.matmul %14, %12, %cst {dimension_numbers = #tpu.dot_dimension_numbers<[1], [0], [0], [1], [0, 0, 1, 1], [], []>} : vector<20x20xf32>, vector<20x40xf32>, vector<20x40xf32> -> vector<20x40xf32>
    %16 = vector.broadcast %3 : vector<20x1xf32> to vector<20x40xf32>
    %17 = arith.addf %15, %16 : vector<20x40xf32>
    %18 = math.tanh %17 : vector<20x40xf32>
    %c1_11 = arith.constant 1 : index
    %c0_12 = arith.constant 0 : index
    %c0_13 = arith.constant 0 : index
    %19 = vector.load %arg1[%c1_11, %c0_12, %c0_13] : memref<2x20x20xf32, #tpu.memory_space<vmem>>, vector<1x20x20xf32>
    %20 = vector.shape_cast %19 : vector<1x20x20xf32> to vector<20x20xf32>
    %cst_14 = arith.constant dense<0.000000e+00> : vector<20x40xf32>
    %21 = tpu.matmul %20, %18, %cst_14 {dimension_numbers = #tpu.dot_dimension_numbers<[1], [0], [0], [1], [0, 0, 1, 1], [], []>} : vector<20x20xf32>, vector<20x40xf32>, vector<20x40xf32> -> vector<20x40xf32>
    %22 = vector.broadcast %4 : vector<20x1xf32> to vector<20x40xf32>
    %23 = arith.addf %21, %22 : vector<20x40xf32>
    %24 = math.tanh %23 : vector<20x40xf32>
    %25 = vector.broadcast %5 : vector<20x1xf32> to vector<20x40xf32>
    %26 = arith.mulf %25, %24 : vector<20x40xf32>
    %cst_15 = arith.constant dense<0.000000e+00> : vector<40xf32>
    %27 = vector.multi_reduction <add>, %26, %cst_15 [0] : vector<20x40xf32> to vector<40xf32>
    %28 = vector.shape_cast %27 : vector<40xf32> to vector<1x40xf32>
    %29 = vector.broadcast %6 : vector<1x1xf32> to vector<1x40xf32>
    %30 = arith.addf %28, %29 : vector<1x40xf32>
    %c0_16 = arith.constant 0 : index
    %c0_17 = arith.constant 0 : index
    %31 = vector.load %arg3[%c0_16, %c0_17] : memref<1x40xf32, #tpu.memory_space<vmem>>, vector<1x40xf32>
    tpu.vector_store %arg3[%c0_16, %c0_17], %30 {strides = array<i32>} : memref<1x40xf32, #tpu.memory_space<vmem>>, vector<1x40xf32>,
    return
  }
}

</mosaic_0001>

<llo_original>
// kernel: tpu_custom_call.1
$region0: #{tpu_custom_call.1}
  #allocation0 [shape = 'u32[]', space=smem, size = 0x4, offset = 0x4, fixed_abs, tag = 'smem constant byte address 0x4 - core index']
  #allocation1 [shape = 'u32[72,128]{1,0:T(1,128)}', space=vmem, size = 0x9000, scoped, tag = 'internal scratch']
  %s0 = inlined_call_operand.vmem [shape: f32[1,40], index: 0, kind: input, shape index: {}]
  %s1 = inlined_call_operand.vmem [shape: f32[2,20,20], index: 1, kind: input, shape index: {}]
  %s2 = inlined_call_operand.vmem [shape: f32[20,6], index: 2, kind: input, shape index: {}]
  %s3 = inlined_call_operand.hbm [shape: f32[1,40], index: 3, kind: output, shape index: {}]
  %s4 = sld [smem:[#allocation0]]
  $region22: #{tpu_custom_call.1} parent=0
    _
  %s6 = ssub.s32 1, %s4
  %s7 = scalar_select 0, %s6, %s4
  $region1: #{tpu_custom_call.1} parent=0
    #allocation2 [shape = 'u8[512]{0}', space=vmem, size = 0x400, scoped, tag = 'output window, operand 0, single buffered']
    #allocation3 [shape = 's32[1]{0}', space=sflag, size = 0x4, scoped, tag = 'scoped memory for tpu_custom_call.1']
    %8 = vsyncpa [#allocation3], 0
    // Predicated region
    $region2: #{tpu_custom_call.1} parent=1 // pred_check
      _
    $region3: #{tpu_custom_call.1} parent=1 // pred_check_branch
      %10 = sbr.rel (0) target = $region5
    $region4: #{tpu_custom_call.1} parent=1 // pred_region
      _
    $region5: #{tpu_custom_call.1} parent=1 // pred_fallthru
      _
    // Predicated region
    $region6: #{tpu_custom_call.1} parent=1 // pred_check
      _
    $region7: #{tpu_custom_call.1} parent=1 // pred_check_branch
      %12 = sbr.rel (0) target = $region9
    $region8: #{tpu_custom_call.1} parent=1 // pred_region
      _
    $region9: #{tpu_custom_call.1} parent=1 // pred_fallthru
      _
    // Predicated region
    $region10: #{tpu_custom_call.1} parent=1 // pred_check
      _
    $region11: #{tpu_custom_call.1} parent=1 // pred_check_branch
      %14 = sbr.rel (0) target = $region13
    $region12: #{tpu_custom_call.1} parent=1 // pred_region
      _
    $region13: #{tpu_custom_call.1} parent=1 // pred_fallthru
      _
    %v15 = vld [vmem:[%s0] sm:$0x1]
    %v16 = vld [vmem:[%s2] sm:$0xff]
    %v17 = vld [vmem:[%s2 + $0x8] sm:$0xff]
    %v18 = vld [vmem:[%s2 + $0x10] sm:$0xf]
    %v19 = vld [vmem:[%s2] sm:$0x1]
    %21 = vset.pattern.permute.xlu0 0
    %22 = vperm.xlu0 %21, %v16
    %v23 = vpop.permute.xlu0 %22
    %26 = vset.pattern.permute.xlu0 0
    %27 = vperm.xlu0 %26, %v17
    %v28 = vpop.permute.xlu0 %27
    %31 = vset.pattern.permute.xlu0 0
    %32 = vperm.xlu0 %31, %v18
    %v33 = vpop.permute.xlu0 %32
    %v36 = vperm.slane %v15, 0
    %v38 = vmul.f32 %v23, %v36
    %v39 = vmul.f32 %v28, %v36
    %v40 = vmul.f32 %v33, %v36
    %41 = vset.pattern.permute.xlu0 1
    %42 = vperm.xlu0 %41, %v16
    %v43 = vpop.permute.xlu0 %42
    %45 = vset.pattern.permute.xlu0 1
    %46 = vperm.xlu0 %45, %v17
    %v47 = vpop.permute.xlu0 %46
    %49 = vset.pattern.permute.xlu0 1
    %50 = vperm.xlu0 %49, %v18
    %v51 = vpop.permute.xlu0 %50
    %v53 = vadd.f32 %v38, %v43
    %v54 = vadd.f32 %v39, %v47
    %v55 = vadd.f32 %v40, %v51
    %v56 = vtanh.pop %v53
    %v57 = vtanh.pop %v54
    %v58 = vtanh.pop %v55
    %v59 = vld [vmem:[%s1] sm:$0xff]
    %v60 = vld [vmem:[%s1 + $0x8] sm:$0xff]
    %v61 = vld [vmem:[%s1 + $0x10] sm:$0xf]
    %62 = vset.pattern.permute.xlu0 2
    %63 = vperm.xlu0 %62, %v16
    %v64 = vpop.permute.xlu0 %63
    %66 = vset.pattern.permute.xlu0 2
    %67 = vperm.xlu0 %66, %v17
    %v68 = vpop.permute.xlu0 %67
    %70 = vset.pattern.permute.xlu0 2
    %71 = vperm.xlu0 %70, %v18
    %v72 = vpop.permute.xlu0 %71
    %vm74 = vcmask 162816
    %v76 = vsel %vm74, %v59, 0
    %v79 = vsel %vm74, %v60, 0
    %v82 = vsel %vm74, %v61, 0
    %vm84 = vcmask 1043456
    %v86 = vsel %vm84, %v58, 0
    %88 = vmatpush.msra.mxu0 0.0
    %89 = vmatpush.msra.mxu0 0.0
    %90 = vmatpush.msra.mxu0 0.0
    %91 = vmatpush.msra.mxu0 0.0
    %92 = vmatpush.msra.mxu0 0.0
    %93 = vmatpush.msra.mxu0 0.0
    %94 = vmatpush.msra.mxu0 0.0
    %95 = vmatpush.msra.mxu0 0.0
    %96 = vmatpush.msra.mxu0 0.0
    %97 = vmatpush.msra.mxu0 0.0
    %98 = vmatpush.msra.mxu0 0.0
    %99 = vmatpush.msra.mxu0 0.0
    %100 = vmatpush.msra.mxu0 0.0
    %101 = vmatpush.msra.mxu0 %v86
    %102 = vmatpush.msra.mxu0 %v57
    %103 = vmatpush.msra.mxu0 %v56
    %104 = vmatmul.f32.gmra.mxu0 %v76
    %v105 = vpop.f32.mrf.mxu0
    %v106 = vadd.f32 %v64, %v105
    %107 = vmatmul.f32.gmra.mxu0 %v79
    %v108 = vpop.f32.mrf.mxu0
    %v109 = vadd.f32 %v68, %v108
    %110 = vmatmul.f32.gmra.mxu0 %v82
    %v111 = vpop.f32.mrf.mxu0
    %v112 = vadd.f32 %v72, %v111
    %113 = vdwg.mxu0
    %v114 = vtanh.pop %v106
    %v115 = vtanh.pop %v109
    %v116 = vtanh.pop %v112
    %s117 = scalar_lea.vmem %s1, 24
    %v118 = vld [vmem:[%s117] sm:$0xff]
    %v119 = vld [vmem:[%s117 + $0x8] sm:$0xff]
    %v120 = vld [vmem:[%s117 + $0x10] sm:$0xf]
    %121 = vset.pattern.permute.xlu0 3
    %122 = vperm.xlu0 %121, %v16
    %v123 = vpop.permute.xlu0 %122
    %125 = vset.pattern.permute.xlu0 3
    %126 = vperm.xlu0 %125, %v17
    %v127 = vpop.permute.xlu0 %126
    %129 = vset.pattern.permute.xlu0 3
    %130 = vperm.xlu0 %129, %v18
    %v131 = vpop.permute.xlu0 %130
    %v134 = vsel %vm74, %v118, 0
    %v137 = vsel %vm74, %v119, 0
    %v140 = vsel %vm74, %v120, 0
    %v143 = vsel %vm84, %v116, 0
    %145 = vmatpush.msra.mxu0 0.0
    %146 = vmatpush.msra.mxu0 0.0
    %147 = vmatpush.msra.mxu0 0.0
    %148 = vmatpush.msra.mxu0 0.0
    %149 = vmatpush.msra.mxu0 0.0
    %150 = vmatpush.msra.mxu0 0.0
    %151 = vmatpush.msra.mxu0 0.0
    %152 = vmatpush.msra.mxu0 0.0
    %153 = vmatpush.msra.mxu0 0.0
    %154 = vmatpush.msra.mxu0 0.0
    %155 = vmatpush.msra.mxu0 0.0
    %156 = vmatpush.msra.mxu0 0.0
    %157 = vmatpush.msra.mxu0 0.0
    %158 = vmatpush.msra.mxu0 %v143
    %159 = vmatpush.msra.mxu0 %v115
    %160 = vmatpush.msra.mxu0 %v114
    %161 = vmatmul.f32.gmra.mxu0 %v134
    %v162 = vpop.f32.mrf.mxu0
    %v163 = vadd.f32 %v123, %v162
    %164 = vmatmul.f32.gmra.mxu0 %v137
    %v165 = vpop.f32.mrf.mxu0
    %v166 = vadd.f32 %v127, %v165
    %167 = vmatmul.f32.gmra.mxu0 %v140
    %v168 = vpop.f32.mrf.mxu0
    %v169 = vadd.f32 %v131, %v168
    %170 = vdwg.mxu0
    %v171 = vtanh.pop %v163
    %v172 = vtanh.pop %v166
    %v173 = vtanh.pop %v169
    %174 = vset.pattern.permute.xlu0 4
    %175 = vperm.xlu0 %174, %v16
    %v176 = vpop.permute.xlu0 %175
    %178 = vset.pattern.permute.xlu0 4
    %179 = vperm.xlu0 %178, %v17
    %v180 = vpop.permute.xlu0 %179
    %182 = vset.pattern.permute.xlu0 4
    %183 = vperm.xlu0 %182, %v18
    %v184 = vpop.permute.xlu0 %183
    %v186 = vmul.f32 %v176, %v171
    %v187 = vmul.f32 %v180, %v172
    %v188 = vmul.f32 %v184, %v173
    %vm189 = vcmask 326656
    %v190 = vsel %vm189, %v186, 0.0
    %v191 = vsel %vm189, %v187, 0.0
    %v192 = vadd.f32 %v190, %v191
    %vm193 = vcmask 322560
    %v194 = vsel %vm193, %v188, 0.0
    %v195 = vadd.f32 %v192, %v194
    %v196 = vrot.slane %v195, 4
    %v197 = vadd.f32 %v195, %v196
    %v198 = vrot.slane %v197, 2
    %v199 = vadd.f32 %v197, %v198
    %v200 = vrot.slane %v199, 1
    %v201 = vadd.f32 %v199, %v200
    %203 = vset.pattern.permute.xlu0 5
    %204 = vperm.xlu0 %203, %v19
    %v205 = vpop.permute.xlu0 %204
    %v207 = vadd.f32 %v201, %v205
    %vm208 = vcmask 319488
    %209 = vst.msk [vmem:[#allocation2] sm:$0x1] %vm208, %v207
    // Predicated region
    $region14: #{tpu_custom_call.1} parent=1 // pred_check
      _
    $region15: #{tpu_custom_call.1} parent=1 // pred_check_branch
      %211 = sbr.rel (0) target = $region17
    $region16: #{tpu_custom_call.1} parent=1 // pred_region
      %213 = vsyncadd [#allocation3], 0
      %s215 = sshll.u32 [#allocation2], 4
      %s216 = int_to_ptr.vmem [resolvable:$true] %s215
      %s217 = sshll.u32 %s3, 4
      %s218 = int_to_ptr.hbm [resolvable:$true] %s217
      %220 = dma.vmem_to_hbm [thread:$0]  %s216, 16, %s218, [#allocation3]
    $region17: #{tpu_custom_call.1} parent=1 // pred_fallthru
      _
    // Predicated region
    $region18: #{tpu_custom_call.1} parent=1 // pred_check
      _
    $region19: #{tpu_custom_call.1} parent=1 // pred_check_branch
      %222 = sbr.rel (0) target = $region21
    $region20: #{tpu_custom_call.1} parent=1 // pred_region
      %224 = dma.done [#allocation3], 16
    $region21: #{tpu_custom_call.1} parent=1 // pred_fallthru
      _
    %225 = vsyncpa [#allocation3], 1

</llo_original>
